<compile_context>
chip_gen: v7x
topology: tpu7x:2x2x1
jax: 0.10.0
libtpu: 0.0.40
codegen_flags: <defaults>
</compile_context>

<pallas_src>
import math
from functools import partial

import jax
import jax.numpy as jnp
from jax import lax
from jax.experimental import pallas as pl
from jax.experimental.pallas import tpu as pltpu

LN_EPS = 1e-5                      # torch.nn.LayerNorm default
_INV_SQRT2 = 1.0 / math.sqrt(2.0)


def _round_up(x, m):
    return ((x + m - 1) // m) * m


def _ln_linear_gelu(x_f32, gamma, beta, w_bf16, bias):
    """LayerNorm -> Linear -> GELU.  VPU/EUP math in f32, MXU inputs in bf16."""
    mean = jnp.mean(x_f32, axis=-1, keepdims=True)
    xc = x_f32 - mean
    var = jnp.mean(xc * xc, axis=-1, keepdims=True)
    x_hat = xc * lax.rsqrt(var + LN_EPS)
    x_hat = x_hat * gamma + beta
    y = jnp.dot(x_hat.astype(jnp.bfloat16), w_bf16,
                preferred_element_type=jnp.float32) + bias
    # Dropout: identity in eval mode.
    # TODO(synk): training-mode nn.Dropout(p) not implemented (eval semantics).
    # Exact erf-based GELU (torch.nn.GELU default).
    return 0.5 * y * (1.0 + lax.erf(y * _INV_SQRT2))


def _prompt_kernel(pt_ref, gamma_ref, beta_ref, w_ref, b_ref,
                   pproj_ref, psum_ref):
    """Project the P prompt rows once (they are shared by every batch elem)."""
    g = _ln_linear_gelu(pt_ref[...].astype(jnp.float32),
                        gamma_ref[...], beta_ref[...], w_ref[...], b_ref[...])
    pproj_ref[...] = g.astype(pproj_ref.dtype)
    psum_ref[...] = jnp.sum(g, axis=0, keepdims=True)


def _head_kernel(hs_ref, gamma_ref, beta_ref, w_ref, b_ref, pproj_ref, psum_ref,
                 proj_ref, pooled_ref, *, num_real_tokens, num_total_tokens):
    """One batch tile: LN -> Linear(bf16 MXU) -> GELU -> per-batch mean pool.

    hs_ref:     (Bt, S_pad, H)         bert hidden states (token-padded)
    gamma/beta: (1, H)                 LayerNorm params
    w_ref:      (H, D_pad)  bf16       Linear weight (transposed, lane-padded)
    b_ref:      (1, D_pad)             Linear bias (lane-padded)
    pproj_ref:  (P, D_pad)             precomputed prompt projection
    psum_ref:   (1, D_pad)             f32 sum of the P prompt rows
    proj_ref:   (Bt, P + S_pad, D_pad) per-token projected output
    pooled_ref: (Bt, D_pad)            mean over the P + S real tokens
    """
    bt, s_pad, h = hs_ref.shape
    p, d_pad = pproj_ref.shape

    # Flatten batch*tokens into the matmul M dimension (s_pad % 8 == 0 so the
    # reshape is layout-free).
    x = hs_ref[...].reshape(bt * s_pad, h).astype(jnp.float32)
    g = _ln_linear_gelu(x, gamma_ref[...], beta_ref[...], w_ref[...], b_ref[...])
    g3 = g.reshape(bt, s_pad, d_pad)

    # Prompt rows are identical for every batch element: copy the precomputed
    # slab instead of recomputing it B times.
    proj_ref[:, :p, :] = jnp.broadcast_to(pproj_ref[...][None], (bt, p, d_pad))
    proj_ref[:, p:, :] = g3.astype(proj_ref.dtype)

    # Per-batch mean pool over the REAL tokens only (padded token rows masked).
    if num_real_tokens == s_pad:
        g_valid = g3
    else:
        tok = lax.broadcasted_iota(jnp.int32, (1, s_pad, 1), 1)
        g_valid = jnp.where(tok < num_real_tokens, g3, 0.0)
    hidden_sum = jnp.sum(g_valid, axis=1)                   # (bt, d_pad)
    pooled_ref[...] = ((hidden_sum + psum_ref[...]) *
                       (1.0 / num_total_tokens)).astype(pooled_ref.dtype)


def enhanced_text_encoder_head(hidden_states, prompt_tokens, ln_gamma, ln_beta,
                               w, b, *, proj_dtype=jnp.bfloat16,
                               rows_per_tile=512):
    """Concat-free fused head: (pooled (B, D), projected (B, P+S, D)).

    hidden_states: (B, S, H)   stand-in for bert(...).last_hidden_state
    prompt_tokens: (1, P, H)
    ln_gamma, ln_beta: (H,)
    w: (D, H)  torch nn.Linear weight layout;  b: (D,)
    proj_dtype: dtype of `projected` (bf16 halves the largest HBM writeback;
                pass jnp.float32 for exact f32 parity).
    """
    B, S, H = hidden_states.shape
    P = prompt_tokens.shape[1]
    D = w.shape[0]
    T = P + S

    S_pad = _round_up(S, 8)        # sublane-aligned token rows
    D_pad = _round_up(D, 128)      # lane-dense output stores

    gamma2 = ln_gamma.reshape(1, H).astype(jnp.float32)
    beta2 = ln_beta.reshape(1, H).astype(jnp.float32)
    w_t = w.T.astype(jnp.bfloat16)                 # (H, D) MXU-native dtype
    b_f = b.astype(jnp.float32)
    if D_pad != D:
        w_t = jnp.pad(w_t, ((0, 0), (0, D_pad - D)))
        b_f = jnp.pad(b_f, (0, D_pad - D))
    b2 = b_f.reshape(1, D_pad)

    # ---- 1) project the P prompt rows ONCE ---------------------------------
    pt2 = prompt_tokens.reshape(P, H)
    prompt_proj, prompt_sum = pl.pallas_call(
        _prompt_kernel,
        grid_spec=pltpu.PrefetchScalarGridSpec(
            num_scalar_prefetch=0,
            grid=(1,),
            in_specs=[
                pl.BlockSpec((P, H), lambda i: (0, 0)),
                pl.BlockSpec((1, H), lambda i: (0, 0)),
                pl.BlockSpec((1, H), lambda i: (0, 0)),
                pl.BlockSpec((H, D_pad), lambda i: (0, 0)),
                pl.BlockSpec((1, D_pad), lambda i: (0, 0)),
            ],
            out_specs=[
                pl.BlockSpec((P, D_pad), lambda i: (0, 0)),
                pl.BlockSpec((1, D_pad), lambda i: (0, 0)),
            ],
        ),
        out_shape=(
            jax.ShapeDtypeStruct((P, D_pad), proj_dtype),
            jax.ShapeDtypeStruct((1, D_pad), jnp.float32),
        ),
        compiler_params=pltpu.CompilerParams(
            dimension_semantics=("arbitrary",)),
    )(pt2, gamma2, beta2, w_t, b2)

    # ---- 2) main fused head over the bert hidden states --------------------
    # Fold Bt batch elements into one matmul so M ~= rows_per_tile, but keep
    # >= 2 grid steps when B >= 2 so both v7x TensorCores get work.
    Bt = max(1, min(B, max(1, rows_per_tile // S_pad)))
    if B >= 2:
        Bt = min(Bt, -(-B // 2))
    n_tiles = -(-B // Bt)
    B_pad = n_tiles * Bt

    hs = hidden_states
    if B_pad != B or S_pad != S:
        hs = jnp.pad(hs, ((0, B_pad - B), (0, S_pad - S), (0, 0)))

    # VMEM budget: double-buffered activation blocks + (double-buffered, small)
    # constants; sized well under v7x's 64 MiB physical / 32 MiB default scope.
    # (If H*D grows large, the constant in_specs could additionally be
    # single-buffered with pipeline_mode=pl.Buffered(1) to free more headroom.)
    proj_isz = jnp.dtype(proj_dtype).itemsize
    hs_isz = jnp.dtype(hs.dtype).itemsize
    blk_bytes = (Bt * S_pad * H * hs_isz
                 + Bt * (P + S_pad) * D_pad * proj_isz
                 + Bt * D_pad * 4)
    const_bytes = (2 * H * 4 + H * D_pad * 2 + D_pad * 4
                   + P * D_pad * proj_isz + D_pad * 4)
    vmem_limit = int(min(max(2 * (blk_bytes + const_bytes) + (8 << 20),
                             32 << 20), 48 << 20))

    kernel = partial(_head_kernel, num_real_tokens=S, num_total_tokens=T)
    projected_p, pooled_p = pl.pallas_call(
        kernel,
        grid_spec=pltpu.PrefetchScalarGridSpec(
            num_scalar_prefetch=0,
            grid=(n_tiles,),
            in_specs=[
                pl.BlockSpec((Bt, S_pad, H), lambda i: (i, 0, 0)),
                pl.BlockSpec((1, H), lambda i: (0, 0)),
                pl.BlockSpec((1, H), lambda i: (0, 0)),
                pl.BlockSpec((H, D_pad), lambda i: (0, 0)),
                pl.BlockSpec((1, D_pad), lambda i: (0, 0)),
                pl.BlockSpec((P, D_pad), lambda i: (0, 0)),
                pl.BlockSpec((1, D_pad), lambda i: (0, 0)),
            ],
            out_specs=[
                pl.BlockSpec((Bt, P + S_pad, D_pad), lambda i: (i, 0, 0)),
                pl.BlockSpec((Bt, D_pad), lambda i: (i, 0)),
            ],
        ),
        out_shape=(
            jax.ShapeDtypeStruct((B_pad, P + S_pad, D_pad), proj_dtype),
            jax.ShapeDtypeStruct((B_pad, D_pad), jnp.float32),
        ),
        compiler_params=pltpu.CompilerParams(
            dimension_semantics=("parallel",),
            vmem_limit_bytes=vmem_limit,
        ),
    )(hs, gamma2, beta2, w_t, b2, prompt_proj, prompt_sum)

    # Strip batch/token/lane padding (no-ops when already aligned; at realistic
    # sizes choose output_dim as a multiple of 128 to avoid the D slice).
    pooled = pooled_p[:B, :D]
    projected = projected_p[:B, :T, :D]
    return pooled, projected


def _reference(hidden_states, prompt_tokens, ln_gamma, ln_beta, w, b):
    """Pure-JAX f32 reference of the same math, for a sanity check."""
    B = hidden_states.shape[0]
    prompts = jnp.broadcast_to(prompt_tokens, (B,) + prompt_tokens.shape[1:])
    x = jnp.concatenate([prompts, hidden_states], axis=1)
    mean = jnp.mean(x, axis=-1, keepdims=True)
    var = jnp.mean((x - mean) ** 2, axis=-1, keepdims=True)
    xh = (x - mean) / jnp.sqrt(var + LN_EPS) * ln_gamma + ln_beta
    y = jnp.einsum("bth,dh->btd", xh, w) + b
    g = 0.5 * y * (1.0 + lax.erf(y * _INV_SQRT2))
    return jnp.mean(g, axis=1), g


if __name__ == "__main__":
    key = jax.random.PRNGKey(0)
    k1, k2, k3, k4, k5, k6 = jax.random.split(key, 6)

    # Small, module-consistent shapes:
    B = 2          # batch (len(text))
    S = 8          # tokenized sequence length (<= 77)
    H = 32         # bert.config.hidden_size (small stand-in)
    D = 16         # output_dim
    P = 8          # num_prompt_tokens (as in the module)

    # Stand-in for bert(...).last_hidden_state (backbone not translatable).
    hidden_states = jax.random.normal(k1, (B, S, H), dtype=jnp.float32)
    # nn.Parameter(torch.randn(1, 8, hidden_size))
    prompt_tokens = jax.random.normal(k2, (1, P, H), dtype=jnp.float32)
    # nn.LayerNorm(H) params (perturbed so they are non-trivial)
    ln_gamma = jnp.ones((H,), jnp.float32) + 0.01 * jax.random.normal(k3, (H,))
    ln_beta = 0.01 * jax.random.normal(k4, (H,), dtype=jnp.float32)
    # nn.Linear(H, D): torch layout (out_features, in_features)
    w = jax.random.normal(k5, (D, H), dtype=jnp.float32) / math.sqrt(H)
    b = 0.01 * jax.random.normal(k6, (D,), dtype=jnp.float32)

    pooled, projected = enhanced_text_encoder_head(
        hidden_states, prompt_tokens, ln_gamma, ln_beta, w, b)
    jax.block_until_ready((pooled, projected))

    pooled_ref, projected_ref = _reference(
        hidden_states, prompt_tokens, ln_gamma, ln_beta, w, b)

    assert pooled.shape == (B, D) and projected.shape == (B, P + S, D)
    # bf16 MXU inputs + bf16 `projected` output => looser-than-f32 tolerance.
    assert jnp.allclose(pooled, pooled_ref, atol=2e-2, rtol=2e-2)
    assert jnp.allclose(projected.astype(jnp.float32), projected_ref,
                        atol=3e-2, rtol=3e-2)

    print("KERNEL_OK")
</pallas_src>

<mosaic_0001>
module attributes {stable_mosaic.version = 11 : i64} {
  func.func @_prompt_kernel(%arg0: i32, %arg1: memref<8x32xf32, #tpu.memory_space<vmem>>, %arg2: memref<1x32xf32, #tpu.memory_space<vmem>>, %arg3: memref<1x32xf32, #tpu.memory_space<vmem>>, %arg4: memref<32x128xbf16, #tpu.memory_space<vmem>>, %arg5: memref<1x128xf32, #tpu.memory_space<vmem>>, %arg6: memref<8x128xbf16, #tpu.memory_space<vmem>>, %arg7: memref<1x128xf32, #tpu.memory_space<vmem>>) attributes {dimension_semantics = [#tpu.dimension_semantics<arbitrary>], iteration_bounds = array<i64: 1>, scalar_prefetch = 0 : i64, scratch_operands = 0 : i64, tpu.core_type = #tpu.core_type<tc>, window_params = [{pipeline_mode = #tpu.pipeline_mode<synchronous>, transform_indices = @transform_0, window_bounds = array<i64: 8, 32>}, {pipeline_mode = #tpu.pipeline_mode<synchronous>, transform_indices = @transform_1, window_bounds = array<i64: 1, 32>}, {pipeline_mode = #tpu.pipeline_mode<synchronous>, transform_indices = @transform_2, window_bounds = array<i64: 1, 32>}, {pipeline_mode = #tpu.pipeline_mode<synchronous>, transform_indices = @transform_3, window_bounds = array<i64: 32, 128>}, {pipeline_mode = #tpu.pipeline_mode<synchronous>, transform_indices = @transform_4, window_bounds = array<i64: 1, 128>}, {pipeline_mode = #tpu.pipeline_mode<synchronous>, transform_indices = @transform_5, window_bounds = array<i64: 8, 128>}, {pipeline_mode = #tpu.pipeline_mode<synchronous>, transform_indices = @transform_6, window_bounds = array<i64: 1, 128>}]} {
    %c0 = arith.constant 0 : index
    %c0_0 = arith.constant 0 : index
    %0 = vector.load %arg1[%c0, %c0_0] : memref<8x32xf32, #tpu.memory_space<vmem>>, vector<8x32xf32>
    %c0_1 = arith.constant 0 : index
    %c0_2 = arith.constant 0 : index
    %1 = vector.load %arg2[%c0_1, %c0_2] : memref<1x32xf32, #tpu.memory_space<vmem>>, vector<1x32xf32>
    %c0_3 = arith.constant 0 : index
    %c0_4 = arith.constant 0 : index
    %2 = vector.load %arg3[%c0_3, %c0_4] : memref<1x32xf32, #tpu.memory_space<vmem>>, vector<1x32xf32>
    %c0_5 = arith.constant 0 : index
    %c0_6 = arith.constant 0 : index
    %3 = vector.load %arg4[%c0_5, %c0_6] : memref<32x128xbf16, #tpu.memory_space<vmem>>, vector<32x128xbf16>
    %c0_7 = arith.constant 0 : index
    %c0_8 = arith.constant 0 : index
    %4 = vector.load %arg5[%c0_7, %c0_8] : memref<1x128xf32, #tpu.memory_space<vmem>>, vector<1x128xf32>
    %cst = arith.constant dense<0.000000e+00> : vector<8xf32>
    %5 = vector.multi_reduction <add>, %0, %cst [1] : vector<8x32xf32> to vector<8xf32>
    %6 = vector.shape_cast %5 : vector<8xf32> to vector<8x1xf32>
    %cst_9 = arith.constant 3.200000e+01 : f32
    %7 = vector.broadcast %cst_9 : f32 to vector<8x1xf32>
    %8 = arith.divf %6, %7 : vector<8x1xf32>
    %9 = vector.broadcast %8 : vector<8x1xf32> to vector<8x32xf32>
    %10 = arith.subf %0, %9 : vector<8x32xf32>
    %11 = arith.mulf %10, %10 : vector<8x32xf32>
    %cst_10 = arith.constant dense<0.000000e+00> : vector<8xf32>
    %12 = vector.multi_reduction <add>, %11, %cst_10 [1] : vector<8x32xf32> to vector<8xf32>
    %13 = vector.shape_cast %12 : vector<8xf32> to vector<8x1xf32>
    %cst_11 = arith.constant 3.200000e+01 : f32
    %14 = vector.broadcast %cst_11 : f32 to vector<8x1xf32>
    %15 = arith.divf %13, %14 : vector<8x1xf32>
    %cst_12 = arith.constant 9.99999974E-6 : f32
    %16 = vector.broadcast %cst_12 : f32 to vector<8x1xf32>
    %17 = arith.addf %15, %16 : vector<8x1xf32>
    %18 = math.rsqrt %17 : vector<8x1xf32>
    %19 = vector.broadcast %18 : vector<8x1xf32> to vector<8x32xf32>
    %20 = arith.mulf %10, %19 : vector<8x32xf32>
    %21 = vector.broadcast %1 : vector<1x32xf32> to vector<8x32xf32>
    %22 = arith.mulf %20, %21 : vector<8x32xf32>
    %23 = vector.broadcast %2 : vector<1x32xf32> to vector<8x32xf32>
    %24 = arith.addf %22, %23 : vector<8x32xf32>
    %25 = arith.truncf %24 : vector<8x32xf32> to vector<8x32xbf16>
    %cst_13 = arith.constant dense<0.000000e+00> : vector<8x128xf32>
    %26 = tpu.matmul %25, %3, %cst_13 {dimension_numbers = #tpu.dot_dimension_numbers<[1], [0], [0], [1], [0, 0, 1, 1], [], []>} : vector<8x32xbf16>, vector<32x128xbf16>, vector<8x128xf32> -> vector<8x128xf32>
    %27 = vector.broadcast %4 : vector<1x128xf32> to vector<8x128xf32>
    %28 = arith.addf %26, %27 : vector<8x128xf32>
    %cst_14 = arith.constant 5.000000e-01 : f32
    %29 = vector.broadcast %cst_14 : f32 to vector<8x128xf32>
    %30 = arith.mulf %29, %28 : vector<8x128xf32>
    %cst_15 = arith.constant 0.707106769 : f32
    %31 = vector.broadcast %cst_15 : f32 to vector<8x128xf32>
    %32 = arith.mulf %28, %31 : vector<8x128xf32>
    %33 = math.erf %32 : vector<8x128xf32>
    %cst_16 = arith.constant 1.000000e+00 : f32
    %34 = vector.broadcast %cst_16 : f32 to vector<8x128xf32>
    %35 = arith.addf %34, %33 : vector<8x128xf32>
    %36 = arith.mulf %30, %35 : vector<8x128xf32>
    %37 = arith.truncf %36 : vector<8x128xf32> to vector<8x128xbf16>
    %c0_17 = arith.constant 0 : index
    %c0_18 = arith.constant 0 : index
    %38 = vector.load %arg6[%c0_17, %c0_18] : memref<8x128xbf16, #tpu.memory_space<vmem>>, vector<8x128xbf16>
    tpu.vector_store %arg6[%c0_17, %c0_18], %37 {strides = array<i32>} : memref<8x128xbf16, #tpu.memory_space<vmem>>, vector<8x128xbf16>,
    %cst_19 = arith.constant dense<0.000000e+00> : vector<128xf32>
    %39 = vector.multi_reduction <add>, %36, %cst_19 [0] : vector<8x128xf32> to vector<128xf32>
    %40 = vector.shape_cast %39 : vector<128xf32> to vector<1x128xf32>
    %c0_20 = arith.constant 0 : index
    %c0_21 = arith.constant 0 : index
    %41 = vector.load %arg7[%c0_20, %c0_21] : memref<1x128xf32, #tpu.memory_space<vmem>>, vector<1x128xf32>
    tpu.vector_store %arg7[%c0_20, %c0_21], %40 {strides = array<i32>} : memref<1x128xf32, #tpu.memory_space<vmem>>, vector<1x128xf32>,
    return
  }
  func.func @transform_0(%arg0: i32) -> (i32, i32) {
    %c0_i32 = arith.constant 0 : i32
    %c0_i32_0 = arith.constant 0 : i32
    %c0_i32_1 = arith.constant 0 : i32
    return %c0_i32, %c0_i32_0 : i32, i32
  }
  func.func @transform_1(%arg0: i32) -> (i32, i32) {
    %c0_i32 = arith.constant 0 : i32
    %c0_i32_0 = arith.constant 0 : i32
    %c0_i32_1 = arith.constant 0 : i32
    return %c0_i32, %c0_i32_0 : i32, i32
  }
  func.func @transform_2(%arg0: i32) -> (i32, i32) {
    %c0_i32 = arith.constant 0 : i32
    %c0_i32_0 = arith.constant 0 : i32
    %c0_i32_1 = arith.constant 0 : i32
    return %c0_i32, %c0_i32_0 : i32, i32
  }
  func.func @transform_3(%arg0: i32) -> (i32, i32) {
    %c0_i32 = arith.constant 0 : i32
    %c0_i32_0 = arith.constant 0 : i32
    %c0_i32_1 = arith.constant 0 : i32
    return %c0_i32, %c0_i32_0 : i32, i32
  }
  func.func @transform_4(%arg0: i32) -> (i32, i32) {
    %c0_i32 = arith.constant 0 : i32
    %c0_i32_0 = arith.constant 0 : i32
    %c0_i32_1 = arith.constant 0 : i32
    return %c0_i32, %c0_i32_0 : i32, i32
  }
  func.func @transform_5(%arg0: i32) -> (i32, i32) {
    %c0_i32 = arith.constant 0 : i32
    %c0_i32_0 = arith.constant 0 : i32
    %c0_i32_1 = arith.constant 0 : i32
    return %c0_i32, %c0_i32_0 : i32, i32
  }
  func.func @transform_6(%arg0: i32) -> (i32, i32) {
    %c0_i32 = arith.constant 0 : i32
    %c0_i32_0 = arith.constant 0 : i32
    %c0_i32_1 = arith.constant 0 : i32
    return %c0_i32, %c0_i32_0 : i32, i32
  }
}

</mosaic_0001>

<llo_original>
// kernel: tpu_custom_call.1
$region0: #{tpu_custom_call.1}
  #allocation0 [shape = 'u32[]', space=smem, size = 0x4, offset = 0x4, fixed_abs, tag = 'smem constant byte address 0x4 - core index']
  #allocation1 [shape = 'u32[144,128]{1,0:T(1,128)}', space=vmem, size = 0x12000, scoped, tag = 'internal scratch']
  %s0 = inlined_call_operand.hbm [shape: f32[8,32], index: 0, kind: input, shape index: {}]
  %s1 = inlined_call_operand.vmem [shape: f32[1,32], index: 1, kind: input, shape index: {}]
  %s2 = inlined_call_operand.vmem [shape: f32[1,32], index: 2, kind: input, shape index: {}]
  %s3 = inlined_call_operand.hbm [shape: bf16[32,128], index: 3, kind: input, shape index: {}]
  %s4 = inlined_call_operand.vmem [shape: f32[1,128], index: 4, kind: input, shape index: {}]
  %s5 = inlined_call_operand.hbm [shape: bf16[8,128], index: 5, kind: output, shape index: {0}]
  %s6 = inlined_call_operand.hbm [shape: f32[1,128], index: 6, kind: output, shape index: {1}]
  %7 = xla_tuple %s5, %s6
  %s8 = sld [smem:[#allocation0]]
  $region46: #{tpu_custom_call.1} parent=0
    _
  %s10 = ssub.s32 1, %s8
  %s11 = scalar_select 0, %s10, %s8
  $region1: #{tpu_custom_call.1} parent=0
    #allocation2 [shape = 'u8[4096]{0}', space=vmem, size = 0x1000, scoped, tag = 'input window, operand 0, single buffered']
    #allocation3 [shape = 's32[1]{0}', space=sflag, size = 0x4, scoped, tag = 'scoped memory for tpu_custom_call.1']
    #allocation4 [shape = 's32[1]{0}', space=sflag, size = 0x4, scoped, tag = 'scoped memory for tpu_custom_call.1']
    #allocation5 [shape = 'u8[8192]{0}', space=vmem, size = 0x2000, scoped, tag = 'input window, operand 3, single buffered']
    #allocation6 [shape = 's32[1]{0}', space=sflag, size = 0x4, scoped, tag = 'scoped memory for tpu_custom_call.1']
    #allocation7 [shape = 'u8[2048]{0}', space=vmem, size = 0x800, scoped, tag = 'output window, operand 0, single buffered']
    #allocation8 [shape = 'u8[512]{0}', space=vmem, size = 0x400, scoped, tag = 'output window, operand 1, single buffered']
    #allocation9 [shape = 's32[1]{0}', space=sflag, size = 0x4, scoped, tag = 'scoped memory for tpu_custom_call.1']
    %12 = vsyncpa [#allocation3], 0
    %13 = vsyncpa [#allocation6], 0
    %14 = vsyncpa [#allocation4], 0
    %15 = vsyncpa [#allocation9], 0
    // Predicated region
    $region2: #{tpu_custom_call.1} parent=1 // pred_check
      _
    $region3: #{tpu_custom_call.1} parent=1 // pred_check_branch
      %17 = sbr.rel (0) target = $region5
    $region4: #{tpu_custom_call.1} parent=1 // pred_region
      %s19 = ssub.s32 128, 128
      %20 = vsyncadd [#allocation3], %s19
      %s22 = sshll.u32 [#allocation2], 4
      %s23 = int_to_ptr.vmem [resolvable:$true] %s22
      %25 = dma.hbm_to_vmem [thread:$0]  %s0, 128, %s23, [#allocation3]
    $region5: #{tpu_custom_call.1} parent=1 // pred_fallthru
      _
    // Predicated region
    $region6: #{tpu_custom_call.1} parent=1 // pred_check
      _
    $region7: #{tpu_custom_call.1} parent=1 // pred_check_branch
      %27 = sbr.rel (0) target = $region9
    $region8: #{tpu_custom_call.1} parent=1 // pred_region
      _
    $region9: #{tpu_custom_call.1} parent=1 // pred_fallthru
      _
    // Predicated region
    $region10: #{tpu_custom_call.1} parent=1 // pred_check
      _
    $region11: #{tpu_custom_call.1} parent=1 // pred_check_branch
      %29 = sbr.rel (0) target = $region13
    $region12: #{tpu_custom_call.1} parent=1 // pred_region
      _
    $region13: #{tpu_custom_call.1} parent=1 // pred_fallthru
      _
    // Predicated region
    $region14: #{tpu_custom_call.1} parent=1 // pred_check
      _
    $region15: #{tpu_custom_call.1} parent=1 // pred_check_branch
      %31 = sbr.rel (0) target = $region17
    $region16: #{tpu_custom_call.1} parent=1 // pred_region
      %s33 = ssub.s32 256, 256
      %34 = vsyncadd [#allocation6], %s33
      %s35 = sshll.u32 [#allocation5], 4
      %s36 = int_to_ptr.vmem [resolvable:$true] %s35
      %41 = dma.hbm_to_vmem [thread:$0]  %s3, 256, %s36, [#allocation6], 64, 64, 4
    $region17: #{tpu_custom_call.1} parent=1 // pred_fallthru
      _
    // Predicated region
    $region18: #{tpu_custom_call.1} parent=1 // pred_check
      _
    $region19: #{tpu_custom_call.1} parent=1 // pred_check_branch
      %43 = sbr.rel (0) target = $region21
    $region20: #{tpu_custom_call.1} parent=1 // pred_region
      _
    $region21: #{tpu_custom_call.1} parent=1 // pred_fallthru
      _
    // Predicated region
    $region22: #{tpu_custom_call.1} parent=1 // pred_check
      _
    $region23: #{tpu_custom_call.1} parent=1 // pred_check_branch
      %45 = sbr.rel (0) target = $region25
    $region24: #{tpu_custom_call.1} parent=1 // pred_region
      %46 = dma.done [#allocation3], 128
    $region25: #{tpu_custom_call.1} parent=1 // pred_fallthru
      _
    // Predicated region
    $region26: #{tpu_custom_call.1} parent=1 // pred_check
      _
    $region27: #{tpu_custom_call.1} parent=1 // pred_check_branch
      %48 = sbr.rel (0) target = $region29
    $region28: #{tpu_custom_call.1} parent=1 // pred_region
      %49 = dma.done [#allocation6], 256
    $region29: #{tpu_custom_call.1} parent=1 // pred_fallthru
      _
    %v51 = vld [vmem:[#allocation2] sm:$0xff]
    %v52 = vld [vmem:[%s1] sm:$0x1]
    %v53 = vld [vmem:[%s2] sm:$0x1]
    %v54 = vld [vmem:[#allocation5] sm:$0xf]
    %v55 = vld [vmem:[#allocation5 + $0x4] sm:$0xf]
    %v56 = vld [vmem:[#allocation5 + $0x8] sm:$0xf]
    %v57 = vld [vmem:[#allocation5 + $0xc] sm:$0xf]
    %v58 = vld [vmem:[%s4] sm:$0x1]
    %vm59 = vcmask 261120
    %v60 = vsel %vm59, %v51, 0.0
    %61 = vadd.xlane.f32.xlu0 %v60
    %v62 = vpop.xlane.xlu0 %61
    %v63 = vrcp.pop 32.0
    %v64 = vmul.f32 %v62, %v63
    %v65 = vsub.f32 %v51, %v64
    %v66 = vmul.f32 %v65, %v65
    %v67 = vsel %vm59, %v66, 0.0
    %68 = vadd.xlane.f32.xlu0 %v67
    %v69 = vpop.xlane.xlu0 %68
    %v70 = vmul.f32 %v69, %v63
    %v71 = vadd.f32 %v70, 1e-05
    %v72 = vrsqrt.pop %v71
    %v73 = vmul.f32 %v65, %v72
    %v75 = vlaneseq
    %v76 = vshrl.u32 %v75, 7
    %v77 = vsub.s32 0, %v76
    %v78 = vrot.slane %v52, %v77
    %v80 = vmul.f32 %v73, %v78
    %v82 = vlaneseq
    %v83 = vshrl.u32 %v82, 7
    %v84 = vsub.s32 0, %v83
    %v85 = vrot.slane %v53, %v84
    %v87 = vadd.f32 %v80, %v85
    %v88 = vpack.c.bf16 %v87, %v87
    %v90 = vlaneseq
    %v91 = vshrl.u32 %v90, 7
    %v92 = vsub.s32 0, %v91
    %v93 = vrot.slane %v58, %v92
    %v99 = vunpack.c.l.b16 %v54
    %v100 = vunpack.c.l.b16 %v55
    %v101 = vunpack.c.l.b16 %v56
    %v102 = vunpack.c.l.b16 %v57
    %v103 = vpack.c.b16 %v100, %v99
    %v104 = vpack.c.b16 %v102, %v101
    %v108 = vsel %vm59, %v88, 0
    %110 = vmatprep.subr.bf16.mxu0 0
    %111 = vmatpush1.bf16.msra.mxu0 %v103
    %112 = vmatprep.subr.bf16.mxu0 0
    %113 = vmatpush1.bf16.msra.mxu0 %v104
    %114 = vmatprep.subr.bf16.mxu0 0
    %115 = vmatpush1.bf16.msra.mxu0 0
    %116 = vmatprep.subr.bf16.mxu0 0
    %117 = vmatpush1.bf16.msra.mxu0 0
    %118 = vmatprep.subr.bf16.mxu0 0
    %119 = vmatpush1.bf16.msra.mxu0 0
    %120 = vmatprep.subr.bf16.mxu0 0
    %121 = vmatpush1.bf16.msra.mxu0 0
    %122 = vmatprep.subr.bf16.mxu0 0
    %123 = vmatpush1.bf16.msra.mxu0 0
    %124 = vmatprep.subr.bf16.mxu0 0
    %125 = vmatpush1.bf16.msra.mxu0 0
    %126 = vmatprep.subr.bf16.mxu0 0
    %127 = vmatpush1.bf16.msra.mxu0 0
    %128 = vmatprep.subr.bf16.mxu0 0
    %129 = vmatpush1.bf16.msra.mxu0 0
    %130 = vmatprep.subr.bf16.mxu0 0
    %131 = vmatpush1.bf16.msra.mxu0 0
    %132 = vmatprep.subr.bf16.mxu0 0
    %133 = vmatpush1.bf16.msra.mxu0 0
    %134 = vmatprep.subr.bf16.mxu0 0
    %135 = vmatpush1.bf16.msra.mxu0 0
    %136 = vmatprep.subr.bf16.mxu0 0
    %137 = vmatpush1.bf16.msra.mxu0 0
    %138 = vmatprep.subr.bf16.mxu0 0
    %139 = vmatpush1.bf16.msra.mxu0 0
    %140 = vmatprep.subr.bf16.mxu0 0
    %141 = vmatpush1.bf16.msra.mxu0 0
    %142 = vmatprep.mubr.bf16.mxu0 0
    %143 = vmatmul.mubr.bf16.gmra.mrb[0].mxu0 %v108
    %v144 = vpop.f32.mrb[0].mxu0
    %v145 = vadd.f32 %v93, %v144
    %v146 = vpop.f32.mrb[0].mxu0
    %v147 = vpop.f32.mrb[0].mxu0
    %v148 = vpop.f32.mrb[0].mxu0
    %149 = vdwg.mxu0
    %v150 = vmul.f32 %v145, 0.5
    %v151 = vmul.f32 %v145, 0.70710677
    %v152 = verf.f32.pop %v151
    %v153 = vadd.f32 %v152, 1.0
    %v154 = vmul.f32 %v150, %v153
    %v155 = vpack.c.bf16 %v154, %v154
    %156 = vst [vmem:[#allocation7] sm:$0xf] %v155
    %v157 = vrot.slane %v154, 4
    %v158 = vadd.f32 %v154, %v157
    %v159 = vrot.slane %v158, 2
    %v160 = vadd.f32 %v158, %v159
    %v161 = vrot.slane %v160, 1
    %v162 = vadd.f32 %v160, %v161
    %163 = vst [vmem:[#allocation8] sm:$0x1] %v162
    // Predicated region
    $region30: #{tpu_custom_call.1} parent=1 // pred_check
      _
    $region31: #{tpu_custom_call.1} parent=1 // pred_check_branch
      %165 = sbr.rel (0) target = $region33
    $region32: #{tpu_custom_call.1} parent=1 // pred_region
      %s167 = ssub.s32 64, 64
      %168 = vsyncadd [#allocation4], %s167
      %s170 = sshll.u32 [#allocation7], 4
      %s171 = int_to_ptr.vmem [resolvable:$true] %s170
      %173 = dma.vmem_to_hbm [thread:$0]  %s171, 64, %s5, [#allocation4]
    $region33: #{tpu_custom_call.1} parent=1 // pred_fallthru
      _
    // Predicated region
    $region34: #{tpu_custom_call.1} parent=1 // pred_check
      _
    $region35: #{tpu_custom_call.1} parent=1 // pred_check_branch
      %175 = sbr.rel (0) target = $region37
    $region36: #{tpu_custom_call.1} parent=1 // pred_region
      %s177 = ssub.s32 16, 16
      %178 = vsyncadd [#allocation9], %s177
      %s180 = sshll.u32 [#allocation8], 4
      %s181 = int_to_ptr.vmem [resolvable:$true] %s180
      %183 = dma.vmem_to_hbm [thread:$0]  %s181, 16, %s6, [#allocation9]
    $region37: #{tpu_custom_call.1} parent=1 // pred_fallthru
      _
    // Predicated region
    $region38: #{tpu_custom_call.1} parent=1 // pred_check
      _
    $region39: #{tpu_custom_call.1} parent=1 // pred_check_branch
      %185 = sbr.rel (0) target = $region41
    $region40: #{tpu_custom_call.1} parent=1 // pred_region
      %186 = dma.done [#allocation4], 64
    $region41: #{tpu_custom_call.1} parent=1 // pred_fallthru
      _
    // Predicated region
    $region42: #{tpu_custom_call.1} parent=1 // pred_check
      _
    $region43: #{tpu_custom_call.1} parent=1 // pred_check_branch
      %188 = sbr.rel (0) target = $region45
    $region44: #{tpu_custom_call.1} parent=1 // pred_region
      %189 = dma.done [#allocation9], 16
    $region45: #{tpu_custom_call.1} parent=1 // pred_fallthru
      _
    %190 = vsyncpa [#allocation3], 1
    %191 = vsyncpa [#allocation6], 1
    %192 = vsyncpa [#allocation4], 1
    %193 = vsyncpa [#allocation9], 1

</llo_original>
